<compile_context>
chip_gen: v7x
topology: tpu7x:2x2x1
jax: 0.10.0
libtpu: 0.0.40
codegen_flags: <defaults>
</compile_context>

<pallas_src>
import jax
import jax.numpy as jnp
import numpy as np
from jax.experimental import pallas as pl
from jax.experimental.pallas import tpu as pltpu

GROUP_SIZE = 256          # actnn config.group_size
BITS = 2                  # actnn config.activation_compression_bits (uniform at init)
MAX_Q = float(2 ** BITS - 1)
_PACK = 4                 # 2-bit values packed per byte

_TARGET_TILE_ROWS = 4096  # ~4 MiB f32 input per block
_MIN_GRID_STEPS = 16      # keep both v7x TensorCores fed / balanced on big problems


def _make_pack_matrix():
    """(256, 64) matrix with P[4j+k, j] = 4**k: q @ P packs 4 x 2-bit values/byte."""
    p = np.zeros((GROUP_SIZE, GROUP_SIZE // _PACK), np.float32)
    for j in range(GROUP_SIZE // _PACK):
        for k in range(_PACK):
            p[_PACK * j + k, j] = float(4 ** k)
    return p


def _quantize_kernel(x_ref, pack_ref, q_ref, stat_ref):
    # x_ref: (TG, GROUP_SIZE) in the input dtype; upcast in-register.
    x = x_ref[...].astype(jnp.float32)

    mn = jnp.min(x, axis=-1, keepdims=True)              # (TG, 1)
    mx = jnp.max(x, axis=-1, keepdims=True)              # (TG, 1)
    denom = mx - mn
    # guard against constant groups (actnn would produce inf/nan here)
    safe = jnp.where(denom > 0, denom, 1.0)
    scale = jnp.where(denom > 0, MAX_Q / safe, jnp.ones_like(denom))

    q = jnp.clip(jnp.round((x - mn) * scale), 0.0, MAX_Q)   # (TG, 256) in {0..3}

    # 4:1 bit-pack on the (otherwise idle) MXU: exact for integers 0..255.
    packed = jnp.dot(q.astype(jnp.bfloat16), pack_ref[...],
                     preferred_element_type=jnp.float32)    # (TG, 64)
    q_ref[...] = packed.astype(jnp.int32).astype(jnp.uint8)

    # Fused per-group stats: lane 0 = scale, lane 1 = min (bf16, as actnn returns).
    lane = jax.lax.broadcasted_iota(jnp.int32, stat_ref.shape, 1)   # (TG, 2)
    stat_ref[...] = jnp.where(lane == 0, scale, mn).astype(jnp.bfloat16)


def _choose_tile_rows(n_rows: int) -> int:
    """Pick the row-tile: big enough to amortize per-step overhead, small enough
    to fit VMEM on v7x and to leave several grid steps for megacore balance."""
    if n_rows <= 8:
        return n_rows
    tg = min(_TARGET_TILE_ROWS, n_rows)
    desired_steps = min(_MIN_GRID_STEPS, max(1, n_rows // 1024))
    tg = min(tg, -(-n_rows // desired_steps))       # ceil-div
    return max(8, (tg // 8) * 8)                    # sublane multiple


def distribute_ara_actnn_forward(x, q_input_aux, q_bits_aux, q_scale_aux, q_min_aux):
    """Forward of Distribute_ARA_Actnn.

    Returns (input_clone, q_input, q_bits, q_scale, q_min).
    The aux arguments are only stashed for backward in the original module and
    do not affect the forward outputs.
    """
    del q_input_aux, q_bits_aux, q_scale_aux, q_min_aux  # forward does not use them

    N = x.shape[0]
    D = int(np.prod(x.shape[1:]))
    x_flat = x.reshape(N, D)                              # keep original dtype

    pad = (-D) % GROUP_SIZE
    if pad:
        # TODO(synk): fold the ragged-tail handling into the kernel with an iota
        # column mask (avoids an extra full HBM read+write when D % 256 != 0).
        x_flat = jnp.pad(x_flat, ((0, 0), (0, pad)))
    num_groups = x_flat.shape[1] // GROUP_SIZE
    R = N * num_groups
    xg = x_flat.reshape(R, GROUP_SIZE)                    # one quantization group per row

    TG = _choose_tile_rows(R)
    grid = (pl.cdiv(R, TG),)

    pack_mat = jnp.asarray(_make_pack_matrix(), dtype=jnp.bfloat16)

    out_shapes = (
        jax.ShapeDtypeStruct((R, GROUP_SIZE // _PACK), jnp.uint8),   # packed q (4 vals/byte)
        jax.ShapeDtypeStruct((R, 2), jnp.bfloat16),                  # [scale, min] per group
    )

    q_flat, stats = pl.pallas_call(
        _quantize_kernel,
        out_shape=out_shapes,
        grid=grid,
        in_specs=[
            pl.BlockSpec((TG, GROUP_SIZE), lambda i: (i, 0)),
            pl.BlockSpec((GROUP_SIZE, GROUP_SIZE // _PACK), lambda i: (0, 0)),
        ],
        out_specs=(
            pl.BlockSpec((TG, GROUP_SIZE // _PACK), lambda i: (i, 0)),
            pl.BlockSpec((TG, 2), lambda i: (i, 0)),
        ),
        compiler_params=pltpu.CompilerParams(
            dimension_semantics=("parallel",),
            vmem_limit_bytes=32 * 1024 * 1024,
        ),
    )(xg, pack_mat)

    q_input = q_flat.reshape(N, num_groups, GROUP_SIZE // _PACK)
    q_scale = stats[:, 0:1].reshape(N, num_groups, 1)
    q_min = stats[:, 1:2].reshape(N, num_groups, 1)

    # Per-sample bit allocation: at init the QScheme sensitivities are uniform,
    # so every sample gets the default compression bits.
    # TODO(synk): if the QScheme adapts per-sample bits after warmup, feed bits
    # as a scalar-prefetch input instead of this constant.
    q_bits = jnp.full((N,), BITS, dtype=jnp.int32)

    # "input.clone()": JAX arrays are immutable, so x itself is the clone
    # (no extra HBM write).
    x_clone = x

    # TODO(synk): actnn's CUDA packer may use a different byte/word order for the
    # 2-bit fields; here byte j of a group holds elements 4j..4j+3, element 4j in
    # the low bits.
    return x_clone, q_input, q_bits, q_scale, q_min


def _reference(x):
    """Plain-JAX reference of the quantization path (for a sanity check)."""
    N = x.shape[0]
    D = int(np.prod(x.shape[1:]))
    xf = x.reshape(N, D).astype(jnp.float32)
    pad = (-D) % GROUP_SIZE
    if pad:
        xf = jnp.pad(xf, ((0, 0), (0, pad)))
    xg = xf.reshape(N, -1, GROUP_SIZE)
    mn = jnp.min(xg, axis=-1, keepdims=True)
    mx = jnp.max(xg, axis=-1, keepdims=True)
    denom = mx - mn
    safe = jnp.where(denom > 0, denom, 1.0)
    scale = jnp.where(denom > 0, MAX_Q / safe, jnp.ones_like(denom))
    q = jnp.clip(jnp.round((xg - mn) * scale), 0.0, MAX_Q).astype(jnp.int32)
    return q, scale, mn


if __name__ == "__main__":
    key = jax.random.PRNGKey(0)
    k1, _ = jax.random.split(key)

    # NCHW input, small shapes: N=2, C=4, H=W=16  ->  D = 1024 = 4 groups of 256
    x = jax.random.normal(k1, (2, 4, 16, 16), dtype=jnp.float32)

    N = x.shape[0]
    num_groups = int(np.prod(x.shape[1:])) // GROUP_SIZE
    # Aux tensors are pass-throughs for the backward in the original module.
    q_input_aux = jnp.zeros((N, num_groups, GROUP_SIZE // _PACK), jnp.uint8)
    q_bits_aux = jnp.full((N,), BITS, jnp.int32)
    q_scale_aux = jnp.zeros((N, num_groups, 1), jnp.bfloat16)
    q_min_aux = jnp.zeros((N, num_groups, 1), jnp.bfloat16)

    outs = distribute_ara_actnn_forward(x, q_input_aux, q_bits_aux,
                                        q_scale_aux, q_min_aux)
    outs = jax.block_until_ready(outs)
    x_clone, q_input, q_bits, q_scale, q_min = outs

    # Sanity checks against a plain-JAX reference.
    q_ref, scale_ref, min_ref = _reference(x)
    q_ref_np = np.asarray(q_ref).reshape(N, num_groups, GROUP_SIZE // _PACK, _PACK)
    packed_ref = (q_ref_np[..., 0] + 4 * q_ref_np[..., 1]
                  + 16 * q_ref_np[..., 2] + 64 * q_ref_np[..., 3]).astype(np.uint8)

    assert x_clone.shape == x.shape and x_clone.dtype == x.dtype
    np.testing.assert_allclose(np.asarray(x_clone), np.asarray(x), rtol=0, atol=0)
    np.testing.assert_array_equal(np.asarray(q_input), packed_ref)
    np.testing.assert_allclose(np.asarray(q_scale, dtype=np.float32),
                               np.asarray(scale_ref.astype(jnp.bfloat16), dtype=np.float32))
    np.testing.assert_allclose(np.asarray(q_min, dtype=np.float32),
                               np.asarray(min_ref.astype(jnp.bfloat16), dtype=np.float32))
    assert q_bits.shape == (N,) and int(q_bits[0]) == BITS
    assert q_input.dtype == jnp.uint8
    assert q_input.shape == (N, num_groups, GROUP_SIZE // _PACK)
    assert q_scale.dtype == jnp.bfloat16 and q_min.dtype == jnp.bfloat16

    print("KERNEL_OK")
</pallas_src>

<mosaic_0001>
module attributes {stable_mosaic.version = 11 : i64} {
  func.func @_quantize_kernel(%arg0: i32, %arg1: memref<8x256xf32, #tpu.memory_space<vmem>>, %arg2: memref<256x64xbf16, #tpu.memory_space<vmem>>, %arg3: memref<8x64xi8, #tpu.memory_space<vmem>>, %arg4: memref<8x2xbf16, #tpu.memory_space<vmem>>) attributes {dimension_semantics = [#tpu.dimension_semantics<parallel>], iteration_bounds = array<i64: 1>, scalar_prefetch = 0 : i64, scratch_operands = 0 : i64, tpu.core_type = #tpu.core_type<tc>, window_params = [{transform_indices = @transform_0, window_bounds = array<i64: 8, 256>}, {pipeline_mode = #tpu.pipeline_mode<synchronous>, transform_indices = @transform_1, window_bounds = array<i64: 256, 64>}, {transform_indices = @transform_2, window_bounds = array<i64: 8, 64>}, {transform_indices = @transform_3, window_bounds = array<i64: 8, 2>}]} {
    %c0 = arith.constant 0 : index
    %c0_0 = arith.constant 0 : index
    %0 = vector.load %arg1[%c0, %c0_0] : memref<8x256xf32, #tpu.memory_space<vmem>>, vector<8x256xf32>
    %cst = arith.constant dense<0x7F800000> : vector<8xf32>
    %1 = vector.multi_reduction <minimumf>, %0, %cst [1] : vector<8x256xf32> to vector<8xf32>
    %2 = vector.shape_cast %1 : vector<8xf32> to vector<8x1xf32>
    %cst_1 = arith.constant dense<0xFF800000> : vector<8xf32>
    %3 = vector.multi_reduction <maximumf>, %0, %cst_1 [1] : vector<8x256xf32> to vector<8xf32>
    %4 = vector.shape_cast %3 : vector<8xf32> to vector<8x1xf32>
    %5 = arith.subf %4, %2 : vector<8x1xf32>
    %cst_2 = arith.constant 0.000000e+00 : f32
    %6 = vector.broadcast %cst_2 : f32 to vector<8x1xf32>
    %7 = arith.cmpf ogt, %5, %6 : vector<8x1xf32>
    %cst_3 = arith.constant 1.000000e+00 : f32
    %8 = vector.broadcast %cst_3 : f32 to vector<8x1xf32>
    %9 = arith.select %7, %5, %8 : vector<8x1xi1>, vector<8x1xf32>
    %cst_4 = arith.constant 0.000000e+00 : f32
    %10 = vector.broadcast %cst_4 : f32 to vector<8x1xf32>
    %11 = arith.cmpf ogt, %5, %10 : vector<8x1xf32>
    %cst_5 = arith.constant 3.000000e+00 : f32
    %12 = vector.broadcast %cst_5 : f32 to vector<8x1xf32>
    %13 = arith.divf %12, %9 : vector<8x1xf32>
    %cst_6 = arith.constant 1.000000e+00 : f32
    %14 = vector.broadcast %cst_6 : f32 to vector<8x1xf32>
    %15 = arith.select %11, %13, %14 : vector<8x1xi1>, vector<8x1xf32>
    %16 = vector.broadcast %2 : vector<8x1xf32> to vector<8x256xf32>
    %17 = arith.subf %0, %16 : vector<8x256xf32>
    %18 = vector.broadcast %15 : vector<8x1xf32> to vector<8x256xf32>
    %19 = arith.mulf %17, %18 : vector<8x256xf32>
    %20 = math.roundeven %19 : vector<8x256xf32>
    %cst_7 = arith.constant 0.000000e+00 : f32
    %cst_8 = arith.constant 3.000000e+00 : f32
    %21 = vector.broadcast %cst_7 : f32 to vector<8x256xf32>
    %22 = arith.maximumf %21, %20 : vector<8x256xf32>
    %23 = vector.broadcast %cst_8 : f32 to vector<8x256xf32>
    %24 = arith.minimumf %23, %22 : vector<8x256xf32>
    %25 = arith.truncf %24 : vector<8x256xf32> to vector<8x256xbf16>
    %c0_9 = arith.constant 0 : index
    %c0_10 = arith.constant 0 : index
    %26 = vector.load %arg2[%c0_9, %c0_10] : memref<256x64xbf16, #tpu.memory_space<vmem>>, vector<256x64xbf16>
    %cst_11 = arith.constant dense<0.000000e+00> : vector<8x64xf32>
    %27 = tpu.matmul %25, %26, %cst_11 {dimension_numbers = #tpu.dot_dimension_numbers<[1], [0], [0], [1], [0, 0, 1, 1], [], []>} : vector<8x256xbf16>, vector<256x64xbf16>, vector<8x64xf32> -> vector<8x64xf32>
    %28 = arith.fptosi %27 : vector<8x64xf32> to vector<8x64xi32>
    %29 = arith.trunci %28 : vector<8x64xi32> to vector<8x64xi8>
    %c0_12 = arith.constant 0 : index
    %c0_13 = arith.constant 0 : index
    %30 = vector.load %arg3[%c0_12, %c0_13] : memref<8x64xi8, #tpu.memory_space<vmem>>, vector<8x64xi8>
    tpu.vector_store %arg3[%c0_12, %c0_13], %29 {strides = array<i32>} : memref<8x64xi8, #tpu.memory_space<vmem>>, vector<8x64xi8>,
    %31 = tpu.iota {dimensions = array<i32: 1>} : vector<8x2xi32>
    %c0_i32 = arith.constant 0 : i32
    %32 = vector.broadcast %c0_i32 : i32 to vector<8x2xi32>
    %33 = arith.cmpi eq, %31, %32 : vector<8x2xi32>
    %34 = vector.shape_cast %15 : vector<8x1xf32> to vector<8x1xf32>
    %35 = vector.broadcast %34 : vector<8x1xf32> to vector<8x2xf32>
    %36 = vector.shape_cast %2 : vector<8x1xf32> to vector<8x1xf32>
    %37 = vector.broadcast %36 : vector<8x1xf32> to vector<8x2xf32>
    %38 = arith.select %33, %35, %37 : vector<8x2xi1>, vector<8x2xf32>
    %39 = arith.truncf %38 : vector<8x2xf32> to vector<8x2xbf16>
    %c0_14 = arith.constant 0 : index
    %c0_15 = arith.constant 0 : index
    %40 = vector.load %arg4[%c0_14, %c0_15] : memref<8x2xbf16, #tpu.memory_space<vmem>>, vector<8x2xbf16>
    tpu.vector_store %arg4[%c0_14, %c0_15], %39 {strides = array<i32>} : memref<8x2xbf16, #tpu.memory_space<vmem>>, vector<8x2xbf16>,
    return
  }
  func.func @transform_0(%arg0: i32) -> (i32, i32) {
    %c0_i32 = arith.constant 0 : i32
    %c0_i32_0 = arith.constant 0 : i32
    return %arg0, %c0_i32 : i32, i32
  }
  func.func @transform_1(%arg0: i32) -> (i32, i32) {
    %c0_i32 = arith.constant 0 : i32
    %c0_i32_0 = arith.constant 0 : i32
    %c0_i32_1 = arith.constant 0 : i32
    return %c0_i32, %c0_i32_0 : i32, i32
  }
  func.func @transform_2(%arg0: i32) -> (i32, i32) {
    %c0_i32 = arith.constant 0 : i32
    %c0_i32_0 = arith.constant 0 : i32
    return %arg0, %c0_i32 : i32, i32
  }
  func.func @transform_3(%arg0: i32) -> (i32, i32) {
    %c0_i32 = arith.constant 0 : i32
    %c0_i32_0 = arith.constant 0 : i32
    return %arg0, %c0_i32 : i32, i32
  }
}

</mosaic_0001>

<llo_original>
// kernel: tpu_custom_call.1
$region0: #{tpu_custom_call.1}
  #allocation0 [shape = 'u32[]', space=smem, size = 0x4, offset = 0x4, fixed_abs, tag = 'smem constant byte address 0x4 - core index']
  #allocation1 [shape = 'u32[144,128]{1,0:T(1,128)}', space=vmem, size = 0x12000, scoped, tag = 'internal scratch']
  %s0 = inlined_call_operand.vmem [shape: f32[8,256], index: 0, kind: input, shape index: {}]
  %s1 = inlined_call_operand.vmem [shape: bf16[256,64], index: 1, kind: input, shape index: {}]
  %s2 = inlined_call_operand.hbm [shape: u8[8,64], index: 2, kind: output, shape index: {0}]
  %s3 = inlined_call_operand.vmem [shape: bf16[8,2], index: 3, kind: output, shape index: {1}]
  %4 = xla_tuple %s2, %s3
  %s5 = sld [smem:[#allocation0]]
  $region26: #{tpu_custom_call.1} parent=0
    _
  %s7 = ssub.s32 1, %s5
  %s8 = scalar_select 0, %s7, %s5
  $region1: #{tpu_custom_call.1} parent=0
    #allocation2 [shape = 'u8[1024]{0}', space=vmem, size = 0x400, scoped, tag = 'output window, operand 0, single buffered']
    #allocation3 [shape = 's32[1]{0}', space=sflag, size = 0x4, scoped, tag = 'scoped memory for tpu_custom_call.1']
    %9 = vsyncpa [#allocation3], 0
    // Predicated region
    $region2: #{tpu_custom_call.1} parent=1 // pred_check
      _
    $region3: #{tpu_custom_call.1} parent=1 // pred_check_branch
      %11 = sbr.rel (0) target = $region5
    $region4: #{tpu_custom_call.1} parent=1 // pred_region
      _
    $region5: #{tpu_custom_call.1} parent=1 // pred_fallthru
      _
    // Predicated region
    $region6: #{tpu_custom_call.1} parent=1 // pred_check
      _
    $region7: #{tpu_custom_call.1} parent=1 // pred_check_branch
      %13 = sbr.rel (0) target = $region9
    $region8: #{tpu_custom_call.1} parent=1 // pred_region
      _
    $region9: #{tpu_custom_call.1} parent=1 // pred_fallthru
      _
    %v15 = vld [vmem:[%s0] sm:$0xff]
    %v16 = vld [vmem:[%s0 + $0x8] sm:$0xff]
    %v17 = vmin.f32 %v15, %v16
    %18 = vmin.xlane.f32.xlu0 %v17
    %v19 = vpop.xlane.xlu0 %18
    %v20 = vmax.f32 %v15, %v16
    %21 = vmax.xlane.f32.xlu0 %v20
    %v22 = vpop.xlane.xlu0 %21
    %v23 = vsub.f32 %v22, %v19
    %vm24 = vcmp.gt.f32.partialorder %v23, 0.0
    %v25 = vsel %vm24, %v23, 1.0
    %v26 = vrcp.pop %v25
    %v27 = vmul.f32 3.0, %v26
    %v28 = vsel %vm24, %v27, 1.0
    %v29 = vsub.f32 %v15, %v19
    %v30 = vsub.f32 %v16, %v19
    %v31 = vmul.f32 %v29, %v28
    %v32 = vmul.f32 %v30, %v28
    %v33 = vround.ne.pseudo %v31
    %v34 = vround.ne.pseudo %v32
    %v35 = vmax.f32 %v33, 0.0
    %v36 = vmax.f32 %v34, 0.0
    %v37 = vmin.f32 %v35, 3.0
    %v38 = vmin.f32 %v36, 3.0
    %v39 = vpack.c.bf16 %v37, %v37
    %v40 = vpack.c.bf16 %v38, %v38
    %v41 = vld [vmem:[%s1] sm:$0xf]
    %v42 = vld [vmem:[%s1 + $0x4] sm:$0xf]
    %v43 = vld [vmem:[%s1 + $0x8] sm:$0xf]
    %v44 = vld [vmem:[%s1 + $0xc] sm:$0xf]
    %v45 = vld [vmem:[%s1 + $0x10] sm:$0xf]
    %v46 = vld [vmem:[%s1 + $0x14] sm:$0xf]
    %v47 = vld [vmem:[%s1 + $0x18] sm:$0xf]
    %v48 = vld [vmem:[%s1 + $0x1c] sm:$0xf]
    %v49 = vld [vmem:[%s1 + $0x20] sm:$0xf]
    %v50 = vld [vmem:[%s1 + $0x24] sm:$0xf]
    %v51 = vld [vmem:[%s1 + $0x28] sm:$0xf]
    %v52 = vld [vmem:[%s1 + $0x2c] sm:$0xf]
    %v53 = vld [vmem:[%s1 + $0x30] sm:$0xf]
    %v54 = vld [vmem:[%s1 + $0x34] sm:$0xf]
    %v55 = vld [vmem:[%s1 + $0x38] sm:$0xf]
    %v56 = vld [vmem:[%s1 + $0x3c] sm:$0xf]
    %v57 = vld [vmem:[%s1 + $0x40] sm:$0xf]
    %v58 = vld [vmem:[%s1 + $0x44] sm:$0xf]
    %v59 = vld [vmem:[%s1 + $0x48] sm:$0xf]
    %v60 = vld [vmem:[%s1 + $0x4c] sm:$0xf]
    %v61 = vld [vmem:[%s1 + $0x50] sm:$0xf]
    %v62 = vld [vmem:[%s1 + $0x54] sm:$0xf]
    %v63 = vld [vmem:[%s1 + $0x58] sm:$0xf]
    %v64 = vld [vmem:[%s1 + $0x5c] sm:$0xf]
    %v65 = vld [vmem:[%s1 + $0x60] sm:$0xf]
    %v66 = vld [vmem:[%s1 + $0x64] sm:$0xf]
    %v67 = vld [vmem:[%s1 + $0x68] sm:$0xf]
    %v68 = vld [vmem:[%s1 + $0x6c] sm:$0xf]
    %v69 = vld [vmem:[%s1 + $0x70] sm:$0xf]
    %v70 = vld [vmem:[%s1 + $0x74] sm:$0xf]
    %v71 = vld [vmem:[%s1 + $0x78] sm:$0xf]
    %v72 = vld [vmem:[%s1 + $0x7c] sm:$0xf]
    %v105 = vunpack.c.l.b16 %v41
    %v106 = vunpack.c.l.b16 %v42
    %v107 = vunpack.c.l.b16 %v43
    %v108 = vunpack.c.l.b16 %v44
    %v109 = vunpack.c.l.b16 %v45
    %v110 = vunpack.c.l.b16 %v46
    %v111 = vunpack.c.l.b16 %v47
    %v112 = vunpack.c.l.b16 %v48
    %v113 = vunpack.c.l.b16 %v49
    %v114 = vunpack.c.l.b16 %v50
    %v115 = vunpack.c.l.b16 %v51
    %v116 = vunpack.c.l.b16 %v52
    %v117 = vunpack.c.l.b16 %v53
    %v118 = vunpack.c.l.b16 %v54
    %v119 = vunpack.c.l.b16 %v55
    %v120 = vunpack.c.l.b16 %v56
    %v121 = vunpack.c.l.b16 %v57
    %v122 = vunpack.c.l.b16 %v58
    %v123 = vunpack.c.l.b16 %v59
    %v124 = vunpack.c.l.b16 %v60
    %v125 = vunpack.c.l.b16 %v61
    %v126 = vunpack.c.l.b16 %v62
    %v127 = vunpack.c.l.b16 %v63
    %v128 = vunpack.c.l.b16 %v64
    %v129 = vunpack.c.l.b16 %v65
    %v130 = vunpack.c.l.b16 %v66
    %v131 = vunpack.c.l.b16 %v67
    %v132 = vunpack.c.l.b16 %v68
    %v133 = vunpack.c.l.b16 %v69
    %v134 = vunpack.c.l.b16 %v70
    %v135 = vunpack.c.l.b16 %v71
    %v136 = vunpack.c.l.b16 %v72
    %v137 = vpack.c.b16 %v106, %v105
    %v138 = vpack.c.b16 %v108, %v107
    %v139 = vpack.c.b16 %v110, %v109
    %v140 = vpack.c.b16 %v112, %v111
    %v141 = vpack.c.b16 %v114, %v113
    %v142 = vpack.c.b16 %v116, %v115
    %v143 = vpack.c.b16 %v118, %v117
    %v144 = vpack.c.b16 %v120, %v119
    %v145 = vpack.c.b16 %v122, %v121
    %v146 = vpack.c.b16 %v124, %v123
    %v147 = vpack.c.b16 %v126, %v125
    %v148 = vpack.c.b16 %v128, %v127
    %v149 = vpack.c.b16 %v130, %v129
    %v150 = vpack.c.b16 %v132, %v131
    %v151 = vpack.c.b16 %v134, %v133
    %v152 = vpack.c.b16 %v136, %v135
    %169 = vmatprep.subr.bf16.mxu0 0
    %170 = vmatpush1.bf16.msra.mxu0 %v137
    %171 = vmatprep.subr.bf16.mxu0 0
    %172 = vmatpush1.bf16.msra.mxu0 %v138
    %173 = vmatprep.subr.bf16.mxu0 0
    %174 = vmatpush1.bf16.msra.mxu0 %v139
    %175 = vmatprep.subr.bf16.mxu0 0
    %176 = vmatpush1.bf16.msra.mxu0 %v140
    %177 = vmatprep.subr.bf16.mxu0 0
    %178 = vmatpush1.bf16.msra.mxu0 %v141
    %179 = vmatprep.subr.bf16.mxu0 0
    %180 = vmatpush1.bf16.msra.mxu0 %v142
    %181 = vmatprep.subr.bf16.mxu0 0
    %182 = vmatpush1.bf16.msra.mxu0 %v143
    %183 = vmatprep.subr.bf16.mxu0 0
    %184 = vmatpush1.bf16.msra.mxu0 %v144
    %185 = vmatprep.subr.bf16.mxu0 0
    %186 = vmatpush1.bf16.msra.mxu0 %v145
    %187 = vmatprep.subr.bf16.mxu0 0
    %188 = vmatpush1.bf16.msra.mxu0 %v146
    %189 = vmatprep.subr.bf16.mxu0 0
    %190 = vmatpush1.bf16.msra.mxu0 %v147
    %191 = vmatprep.subr.bf16.mxu0 0
    %192 = vmatpush1.bf16.msra.mxu0 %v148
    %193 = vmatprep.subr.bf16.mxu0 0
    %194 = vmatpush1.bf16.msra.mxu0 %v149
    %195 = vmatprep.subr.bf16.mxu0 0
    %196 = vmatpush1.bf16.msra.mxu0 %v150
    %197 = vmatprep.subr.bf16.mxu0 0
    %198 = vmatpush1.bf16.msra.mxu0 %v151
    %199 = vmatprep.subr.bf16.mxu0 0
    %200 = vmatpush1.bf16.msra.mxu0 %v152
    %201 = vmatprep.mubr.bf16.mxu0 %v40
    %202 = vmatmul.mubr.bf16.gmra.mrb[0].mxu0 %v39
    %v203 = vpop.f32.mrb[0].mxu0
    %v204 = vadd.f32 0.0, %v203
    %v205 = vpop.f32.mrb[0].mxu0
    %v206 = vpop.f32.mrb[0].mxu0
    %v207 = vpop.f32.mrb[0].mxu0
    %208 = vdwg.mxu0
    %v209 = vcvt.f32.s32.to.zero.pseudo %v204
    %v210 = vpack.c.b16 %v209, %v209
    %v211 = vpack.c.b8 %v210, %v210
    %vm212 = vcmask 517120
    %213 = vst.msk [vmem:[#allocation2] sm:$0x3] %vm212, %v211
    %v214 = vlaneseq
    %v215 = vand.u32 %v214, 127
    %vm216 = vcmp.eq.s32.totalorder %v215, 0
    %v217 = vsel %vm216, %v28, %v19
    %v218 = vpack.c.bf16 %v217, %v217
    %vm219 = vcmask 11264
    %220 = vst.msk [vmem:[%s3] sm:$0xf] %vm219, %v218
    // Predicated region
    $region10: #{tpu_custom_call.1} parent=1 // pred_check
      _
    $region11: #{tpu_custom_call.1} parent=1 // pred_check_branch
      %222 = sbr.rel (0) target = $region13
    $region12: #{tpu_custom_call.1} parent=1 // pred_region
      %s224 = ssub.s32 32, 32
      %225 = vsyncadd [#allocation3], %s224
      %s227 = sshll.u32 [#allocation2], 4
      %s228 = int_to_ptr.vmem [resolvable:$true] %s227
      %230 = dma.vmem_to_hbm [thread:$0]  %s228, 32, %s2, [#allocation3]
    $region13: #{tpu_custom_call.1} parent=1 // pred_fallthru
      _
    // Predicated region
    $region14: #{tpu_custom_call.1} parent=1 // pred_check
      _
    $region15: #{tpu_custom_call.1} parent=1 // pred_check_branch
      %232 = sbr.rel (0) target = $region17
    $region16: #{tpu_custom_call.1} parent=1 // pred_region
      _
    $region17: #{tpu_custom_call.1} parent=1 // pred_fallthru
      _
    // Predicated region
    $region18: #{tpu_custom_call.1} parent=1 // pred_check
      _
    $region19: #{tpu_custom_call.1} parent=1 // pred_check_branch
      %234 = sbr.rel (0) target = $region21
    $region20: #{tpu_custom_call.1} parent=1 // pred_region
      %235 = dma.done [#allocation3], 32
    $region21: #{tpu_custom_call.1} parent=1 // pred_fallthru
      _
    // Predicated region
    $region22: #{tpu_custom_call.1} parent=1 // pred_check
      _
    $region23: #{tpu_custom_call.1} parent=1 // pred_check_branch
      %237 = sbr.rel (0) target = $region25
    $region24: #{tpu_custom_call.1} parent=1 // pred_region
      _
    $region25: #{tpu_custom_call.1} parent=1 // pred_fallthru
      _
    %238 = vsyncpa [#allocation3], 1

</llo_original>
